<compile_context>
chip_gen: v5e
topology: v5e:2x2
jax: 0.10.0
libtpu: 0.0.40
codegen_flags: <defaults>
</compile_context>

<pallas_src>
import functools

import jax
import jax.numpy as jnp
from jax.experimental import pallas as pl
from jax.experimental.pallas import tpu as pltpu


def _seq_word_dropout_kernel(u_ref, seq_ref, out_ref, *, p: float):
    # u_ref: (tile_rows, 1) uniforms in [0, 1); one per (batch, token) row.
    # keep is 1.0 where the word is kept, 0.0 where it is dropped.
    keep = (u_ref[...] >= jnp.float32(p)).astype(seq_ref.dtype)   # (tile_rows, 1)
    # Broadcast along the hidden (lane) axis — pure VPU splat + multiply.
    out_ref[...] = seq_ref[...] * keep


def _choose_tile_rows(rows: int, d: int, itemsize: int) -> int:
    """Largest row tile with ~2 MiB per seq block (fits v5e default scoped VMEM
    with 2 arrays x 2 pipeline buffers; v6e/v7x have more headroom)."""
    budget = 2 * 1024 * 1024
    if rows * d * itemsize <= budget:
        return rows                      # whole thing in one block
    t = max(8, budget // max(1, d * itemsize))
    t = (t // 8) * 8                     # keep sublane dim a multiple of 8
    return max(8, min(t, rows))


def seq_word_dropout(seq: jax.Array, key: jax.Array, p: float = 0.0) -> jax.Array:
    """Pallas equivalent of SeqWordDropout(p)(seq). seq: (B, T, D)."""
    B, T, D = seq.shape
    p = float(p)

    # Short-circuits: eval-mode dropout should not pay 2x HBM traffic.
    if p <= 0.0:
        return seq
    if p >= 1.0:
        # seq * 0 (not zeros_like) so NaN/Inf propagate like PyTorch.
        return seq * jnp.zeros((), dtype=seq.dtype)

    rows = B * T
    seq2d = seq.reshape(rows, D)

    # One uniform per (batch, token); column layout so it broadcasts along lanes.
    u = jax.random.uniform(key, (rows, 1), dtype=jnp.float32)

    tile_rows = _choose_tile_rows(rows, D, seq.dtype.itemsize)
    grid = (pl.cdiv(rows, tile_rows),)

    # TODO(synk): for D < 128, a lane-dense repack (several tokens per 128-lane
    # row) would avoid masked partial stores; skipped here for clarity since
    # real hidden sizes are multiples of 128.
    out2d = pl.pallas_call(
        functools.partial(_seq_word_dropout_kernel, p=p),
        out_shape=jax.ShapeDtypeStruct((rows, D), seq.dtype),
        grid=grid,
        in_specs=[
            pl.BlockSpec((tile_rows, 1), lambda i: (i, 0)),   # per-token uniforms
            pl.BlockSpec((tile_rows, D), lambda i: (i, 0)),   # seq rows
        ],
        out_specs=pl.BlockSpec((tile_rows, D), lambda i: (i, 0)),
        compiler_params=pltpu.CompilerParams(
            dimension_semantics=("parallel",),
        ),
    )(u, seq2d)

    return out2d.reshape(B, T, D)


if __name__ == "__main__":
    key = jax.random.PRNGKey(0)
    k_data, k_drop = jax.random.split(key)

    B, T, D = 2, 8, 32                       # batch, sequence length, hidden
    seq = jax.random.normal(k_data, (B, T, D), dtype=jnp.float32)

    p = 0.3
    out = jax.block_until_ready(seq_word_dropout(seq, k_drop, p=p))

    # Shape/dtype preserved.
    assert out.shape == seq.shape and out.dtype == seq.dtype

    # Whole-word dropout: every (b, t) vector is either kept exactly or zeroed.
    kept = jnp.all(out == seq, axis=-1)
    dropped = jnp.all(out == 0.0, axis=-1)
    assert bool(jnp.all(kept | dropped))

    # Exact match against a pure-JAX reference using the same uniforms.
    u_ref = jax.random.uniform(k_drop, (B * T, 1), dtype=jnp.float32)
    mask_ref = (u_ref >= jnp.float32(p)).astype(seq.dtype).reshape(B, T, 1)
    expected = seq * mask_ref
    assert bool(jnp.array_equal(out, expected))

    # p = 0.0 must be the identity (fast path, no kernel launch).
    out_id = jax.block_until_ready(seq_word_dropout(seq, k_drop, p=0.0))
    assert bool(jnp.all(out_id == seq))

    print("KERNEL_OK")
</pallas_src>

<mosaic_0001>
module attributes {stable_mosaic.version = 11 : i64} {
  func.func @_seq_word_dropout_kernel(%arg0: i32, %arg1: memref<16x1xf32, #tpu.memory_space<vmem>>, %arg2: memref<16x32xf32, #tpu.memory_space<vmem>>, %arg3: memref<16x32xf32, #tpu.memory_space<vmem>>) attributes {dimension_semantics = [#tpu.dimension_semantics<parallel>], iteration_bounds = array<i64: 1>, scalar_prefetch = 0 : i64, scratch_operands = 0 : i64, tpu.core_type = #tpu.core_type<tc>, window_params = [{transform_indices = @transform_0, window_bounds = array<i64: 16, 1>}, {transform_indices = @transform_1, window_bounds = array<i64: 16, 32>}, {transform_indices = @transform_2, window_bounds = array<i64: 16, 32>}]} {
    %c0 = arith.constant 0 : index
    %c0_0 = arith.constant 0 : index
    %0 = vector.load %arg1[%c0, %c0_0] : memref<16x1xf32, #tpu.memory_space<vmem>>, vector<16x1xf32>
    %cst = arith.constant 3.000000e-01 : f32
    %1 = vector.broadcast %cst : f32 to vector<16x1xf32>
    %2 = arith.cmpf oge, %0, %1 : vector<16x1xf32>
    %3 = arith.extui %2 : vector<16x1xi1> to vector<16x1xi32>
    %4 = arith.sitofp %3 : vector<16x1xi32> to vector<16x1xf32>
    %c0_1 = arith.constant 0 : index
    %c0_2 = arith.constant 0 : index
    %5 = vector.load %arg2[%c0_1, %c0_2] : memref<16x32xf32, #tpu.memory_space<vmem>>, vector<16x32xf32>
    %6 = vector.broadcast %4 : vector<16x1xf32> to vector<16x32xf32>
    %7 = arith.mulf %5, %6 : vector<16x32xf32>
    %c0_3 = arith.constant 0 : index
    %c0_4 = arith.constant 0 : index
    %8 = vector.load %arg3[%c0_3, %c0_4] : memref<16x32xf32, #tpu.memory_space<vmem>>, vector<16x32xf32>
    tpu.vector_store %arg3[%c0_3, %c0_4], %7 {strides = array<i32>} : memref<16x32xf32, #tpu.memory_space<vmem>>, vector<16x32xf32>,
    return
  }
  func.func @transform_0(%arg0: i32) -> (i32, i32) {
    %c0_i32 = arith.constant 0 : i32
    %c0_i32_0 = arith.constant 0 : i32
    return %arg0, %c0_i32 : i32, i32
  }
  func.func @transform_1(%arg0: i32) -> (i32, i32) {
    %c0_i32 = arith.constant 0 : i32
    %c0_i32_0 = arith.constant 0 : i32
    return %arg0, %c0_i32 : i32, i32
  }
  func.func @transform_2(%arg0: i32) -> (i32, i32) {
    %c0_i32 = arith.constant 0 : i32
    %c0_i32_0 = arith.constant 0 : i32
    return %arg0, %c0_i32 : i32, i32
  }
}

</mosaic_0001>

<llo_original>
// kernel: tpu_custom_call.1
$region0: #{tpu_custom_call.1}
  #allocation0 [shape = 'u32[]', space=smem, size = 0x4, offset = 0x4, fixed_abs, tag = 'smem constant byte address 0x4 - core index']
  #allocation1 [shape = 'u32[72,128]{1,0:T(1,128)}', space=vmem, size = 0x9000, scoped, tag = 'internal scratch']
  %s0 = inlined_call_operand.vmem [shape: f32[16,1], index: 0, kind: input, shape index: {}]
  %s1 = inlined_call_operand.vmem [shape: f32[16,32], index: 1, kind: input, shape index: {}]
  %s2 = inlined_call_operand.hbm [shape: f32[16,32], index: 2, kind: output, shape index: {}]
  %s3 = sld [smem:[#allocation0]]
  $region18: #{tpu_custom_call.1} parent=0
    _
  %s5 = ssub.s32 1, %s3
  %s6 = scalar_select 0, %s5, %s3
  $region1: #{tpu_custom_call.1} parent=0
    #allocation2 [shape = 'u8[8192]{0}', space=vmem, size = 0x2000, scoped, tag = 'output window, operand 0, single buffered']
    #allocation3 [shape = 's32[1]{0}', space=sflag, size = 0x4, scoped, tag = 'scoped memory for tpu_custom_call.1']
    %7 = vsyncpa [#allocation3], 0
    // Predicated region
    $region2: #{tpu_custom_call.1} parent=1 // pred_check
      _
    $region3: #{tpu_custom_call.1} parent=1 // pred_check_branch
      %9 = sbr.rel (0) target = $region5
    $region4: #{tpu_custom_call.1} parent=1 // pred_region
      _
    $region5: #{tpu_custom_call.1} parent=1 // pred_fallthru
      _
    // Predicated region
    $region6: #{tpu_custom_call.1} parent=1 // pred_check
      _
    $region7: #{tpu_custom_call.1} parent=1 // pred_check_branch
      %11 = sbr.rel (0) target = $region9
    $region8: #{tpu_custom_call.1} parent=1 // pred_region
      _
    $region9: #{tpu_custom_call.1} parent=1 // pred_fallthru
      _
    %v12 = vld [vmem:[%s0] sm:$0xff]
    %v13 = vld [vmem:[%s0 + $0x8] sm:$0xff]
    %vm14 = vcmp.ge.f32.partialorder %v12, 0.3
    %vm15 = vcmp.ge.f32.partialorder %v13, 0.3
    %v16 = vsel %vm14, 1, 0
    %v17 = vsel %vm15, 1, 0
    %v18 = vcvt.s32.f32 %v16
    %v19 = vcvt.s32.f32 %v17
    %v20 = vld [vmem:[%s1] sm:$0xff]
    %v21 = vld [vmem:[%s1 + $0x8] sm:$0xff]
    %23 = vset.pattern.permute.xlu0 0
    %24 = vperm.xlu0 %23, %v18
    %v25 = vpop.permute.xlu0 %24
    %28 = vset.pattern.permute.xlu0 0
    %29 = vperm.xlu0 %28, %v19
    %v30 = vpop.permute.xlu0 %29
    %v32 = vmul.f32 %v20, %v25
    %v33 = vmul.f32 %v21, %v30
    %vm34 = vcmask 261120
    %35 = vst.msk [vmem:[#allocation2] sm:$0xff] %vm34, %v32
    %36 = vst.msk [vmem:[#allocation2 + $0x8] sm:$0xff] %vm34, %v33
    // Predicated region
    $region10: #{tpu_custom_call.1} parent=1 // pred_check
      _
    $region11: #{tpu_custom_call.1} parent=1 // pred_check_branch
      %38 = sbr.rel (0) target = $region13
    $region12: #{tpu_custom_call.1} parent=1 // pred_region
      %40 = vsyncadd [#allocation3], 0
      %s41 = sshll.u32 [#allocation2], 4
      %s42 = int_to_ptr.vmem [resolvable:$true] %s41
      %s43 = sshll.u32 %s2, 4
      %s44 = int_to_ptr.hbm [resolvable:$true] %s43
      %49 = dma.vmem_to_hbm [thread:$0]  %s42, 256, %s44, [#allocation3], 128, 128, 8
    $region13: #{tpu_custom_call.1} parent=1 // pred_fallthru
      _
    // Predicated region
    $region14: #{tpu_custom_call.1} parent=1 // pred_check
      _
    $region15: #{tpu_custom_call.1} parent=1 // pred_check_branch
      %51 = sbr.rel (0) target = $region17
    $region16: #{tpu_custom_call.1} parent=1 // pred_region
      %53 = dma.done [#allocation3], 256
    $region17: #{tpu_custom_call.1} parent=1 // pred_fallthru
      _
    %54 = vsyncpa [#allocation3], 1

</llo_original>
